<compile_context>
chip_gen: v5e
topology: v5e:2x2
jax: 0.10.0
libtpu: 0.0.40
codegen_flags: <defaults>
</compile_context>

<pallas_src>
import jax
import jax.numpy as jnp
from jax.experimental import pallas as pl
from jax.experimental.pallas import tpu as pltpu

NUM_RANKS, RANK_DIM = 13, 8
NUM_SUITS, SUIT_DIM = 4, 4
OUT_DIM = RANK_DIM + SUIT_DIM      # 12
K_TOTAL = NUM_RANKS + NUM_SUITS    # 17 fused embedding rows


def card_embed_kernel(idx_ref, table_ref, out_ref):
    """Transposed layout: hands on the lane axis.

    idx_ref   : (2n, bt) int32  packed [ranks ; suits+13], one hand per lane
    table_ref : (12, 17) f32    fused block-diagonal table^T with 1/n folded in
    out_ref   : (12, bt) f32    out^T (lane-dense rows)
    """
    two_n, bt = idx_ref.shape
    k_total = table_ref.shape[1]

    # Lane-chunk so the (17, lane) counts accumulator stays in vregs (no spill
    # through the 1-per-cycle vst slot) while bt stays large for pipelining.
    lane = 512 if bt % 512 == 0 else (256 if bt % 256 == 0 else 128)

    table = table_ref[...]                                              # (12, 17)
    iota_k = jax.lax.broadcasted_iota(jnp.int32, (k_total, lane), 0)    # (17, lane)

    for c in range(bt // lane):            # static unroll; few fixed chunks
        lo = c * lane
        counts = jnp.zeros((k_total, lane), jnp.float32)
        for j in range(two_n):             # static unroll; 2n tiny card slots
            row = idx_ref[j:j + 1, lo:lo + lane]                        # (1, lane)
            counts = counts + (row == iota_k).astype(jnp.float32)       # (17, lane)
        # out^T chunk = (T^T/n) @ counts^T : (12,17)@(17,lane) single MXU pass.
        out_ref[:, lo:lo + lane] = jnp.dot(
            table, counts,
            preferred_element_type=jnp.float32,
            precision=jax.lax.Precision.HIGHEST)


def _round_up(x, m):
    return ((x + m - 1) // m) * m


def _fused_table_t(rank_table, suit_table, n):
    """(12, 17) block-diagonal table^T with the 1/n mean folded in."""
    inv_n = 1.0 / float(n)
    t = jnp.zeros((OUT_DIM, K_TOTAL), jnp.float32)
    t = t.at[:RANK_DIM, :NUM_RANKS].set(rank_table.astype(jnp.float32).T * inv_n)
    t = t.at[RANK_DIM:, NUM_RANKS:].set(suit_table.astype(jnp.float32).T * inv_n)
    return t


def card_embedding_batched(ranks, suits, rank_table, suit_table, *, block_b=2048):
    """ranks, suits: (B, n) int indices in [0,13)/[0,4). Returns (B, 12) float32."""
    B, n = ranks.shape
    assert suits.shape == (B, n)
    assert n > 0

    # Packed, transposed indices: (2n, B) int32 -- contiguous lane-dense rows.
    idx_t = jnp.concatenate(
        [ranks.astype(jnp.int32), suits.astype(jnp.int32) + NUM_RANKS], axis=1).T
    table_t = _fused_table_t(rank_table, suit_table, n)

    # Batch tile on the lane axis: multiple of 128, large by default.
    bt = _round_up(min(block_b, _round_up(B, 128)), 128)
    b_pad = _round_up(B, bt)
    # v7x: keep >= 2 grid steps so both TensorCores get work when batch allows.
    if b_pad // bt < 2 and bt > 128:
        bt = _round_up(bt // 2, 128)
        b_pad = _round_up(B, bt)
    if b_pad != B:
        # Padded hands (all-zero indices) produce garbage columns; sliced off below.
        idx_t = jnp.pad(idx_t, ((0, 0), (0, b_pad - B)))

    out_t = pl.pallas_call(
        card_embed_kernel,
        out_shape=jax.ShapeDtypeStruct((OUT_DIM, b_pad), jnp.float32),
        grid=(b_pad // bt,),
        in_specs=[
            pl.BlockSpec((2 * n, bt), lambda i: (0, i)),
            pl.BlockSpec((OUT_DIM, K_TOTAL), lambda i: (0, 0)),
        ],
        out_specs=pl.BlockSpec((OUT_DIM, bt), lambda i: (0, i)),
        compiler_params=pltpu.CompilerParams(
            dimension_semantics=("parallel",)),   # v7x: split batch across 2 TCs
    )(idx_t, table_t)

    # Cheap (12, B) -> (B, 12) relayout on 48 B/hand of useful data.
    return out_t[:, :B].T


def card_embedding(ranks, suits, rank_table, suit_table):
    """Single hand: ranks (n,), suits (n,). Returns (12,) float32."""
    n = int(ranks.shape[0])
    if n == 0:
        # Matches the PyTorch `if not cards: return torch.zeros(12)` branch.
        return jnp.zeros((OUT_DIM,), jnp.float32)
    # TODO(synk): for a genuinely one-hand-at-a-time path, plain
    # jnp.take(...).mean(...) (XLA) beats any kernel launch; the Pallas kernel
    # targets the batched path, which we reuse here with B=1.
    out = card_embedding_batched(ranks.reshape(1, n), suits.reshape(1, n),
                                 rank_table, suit_table)
    return out[0]


if __name__ == "__main__":
    key = jax.random.PRNGKey(0)
    k_rank, k_suit, k_r1, k_s1, k_rb, k_sb, k_rc, k_sc = jax.random.split(key, 8)

    # nn.Embedding default init is N(0, 1).
    rank_table = jax.random.normal(k_rank, (NUM_RANKS, RANK_DIM), dtype=jnp.float32)
    suit_table = jax.random.normal(k_suit, (NUM_SUITS, SUIT_DIM), dtype=jnp.float32)

    # ---- single hand (matches original module's call shape) ----------------
    n_cards = 8
    ranks1 = jax.random.randint(k_r1, (n_cards,), 0, NUM_RANKS, dtype=jnp.int32)
    suits1 = jax.random.randint(k_s1, (n_cards,), 0, NUM_SUITS, dtype=jnp.int32)
    out1 = jax.block_until_ready(card_embedding(ranks1, suits1, rank_table, suit_table))
    ref1 = jnp.concatenate([
        jnp.take(rank_table, ranks1, axis=0).mean(axis=0),
        jnp.take(suit_table, suits1, axis=0).mean(axis=0),
    ])
    assert out1.shape == (OUT_DIM,)
    assert jnp.allclose(out1, ref1, atol=1e-5, rtol=1e-5), (out1, ref1)

    # ---- small batch, single-step grid (default tile) -----------------------
    B, n = 37, 7
    ranks_b = jax.random.randint(k_rb, (B, n), 0, NUM_RANKS, dtype=jnp.int32)
    suits_b = jax.random.randint(k_sb, (B, n), 0, NUM_SUITS, dtype=jnp.int32)
    out_b = jax.block_until_ready(
        card_embedding_batched(ranks_b, suits_b, rank_table, suit_table))
    ref_b = jnp.concatenate([
        jnp.take(rank_table, ranks_b, axis=0).mean(axis=1),
        jnp.take(suit_table, suits_b, axis=0).mean(axis=1),
    ], axis=-1)
    assert out_b.shape == (B, OUT_DIM)
    assert jnp.allclose(out_b, ref_b, atol=1e-5, rtol=1e-5)

    # ---- multi-step grid with batch padding ---------------------------------
    Bc, nc = 300, 5
    ranks_c = jax.random.randint(k_rc, (Bc, nc), 0, NUM_RANKS, dtype=jnp.int32)
    suits_c = jax.random.randint(k_sc, (Bc, nc), 0, NUM_SUITS, dtype=jnp.int32)
    out_c = jax.block_until_ready(
        card_embedding_batched(ranks_c, suits_c, rank_table, suit_table, block_b=128))
    ref_c = jnp.concatenate([
        jnp.take(rank_table, ranks_c, axis=0).mean(axis=1),
        jnp.take(suit_table, suits_c, axis=0).mean(axis=1),
    ], axis=-1)
    assert out_c.shape == (Bc, OUT_DIM)
    assert jnp.allclose(out_c, ref_c, atol=1e-5, rtol=1e-5)

    # ---- empty-hand branch ---------------------------------------------------
    empty = card_embedding(jnp.zeros((0,), jnp.int32), jnp.zeros((0,), jnp.int32),
                           rank_table, suit_table)
    assert empty.shape == (OUT_DIM,) and bool(jnp.all(empty == 0.0))

    print("KERNEL_OK")
</pallas_src>

<mosaic_0001>
module attributes {stable_mosaic.version = 11 : i64} {
  func.func @card_embed_kernel(%arg0: i32, %arg1: memref<16x128xi32, #tpu.memory_space<vmem>>, %arg2: memref<12x17xf32, #tpu.memory_space<vmem>>, %arg3: memref<12x128xf32, #tpu.memory_space<vmem>>) attributes {dimension_semantics = [#tpu.dimension_semantics<parallel>], iteration_bounds = array<i64: 1>, scalar_prefetch = 0 : i64, scratch_operands = 0 : i64, tpu.core_type = #tpu.core_type<tc>, window_params = [{transform_indices = @transform_0, window_bounds = array<i64: 16, 128>}, {pipeline_mode = #tpu.pipeline_mode<synchronous>, transform_indices = @transform_1, window_bounds = array<i64: 12, 17>}, {transform_indices = @transform_2, window_bounds = array<i64: 12, 128>}]} {
    %c0 = arith.constant 0 : index
    %c0_0 = arith.constant 0 : index
    %0 = vector.load %arg2[%c0, %c0_0] : memref<12x17xf32, #tpu.memory_space<vmem>>, vector<12x17xf32>
    %1 = tpu.iota {dimensions = array<i32: 0>} : vector<17x128xi32>
    %cst = arith.constant 0.000000e+00 : f32
    %2 = vector.broadcast %cst : f32 to vector<17x128xf32>
    %c0_1 = arith.constant 0 : index
    %c0_2 = arith.constant 0 : index
    %3 = vector.load %arg1[%c0_1, %c0_2] : memref<16x128xi32, #tpu.memory_space<vmem>>, vector<1x128xi32>
    %4 = vector.broadcast %3 : vector<1x128xi32> to vector<17x128xi32>
    %5 = arith.cmpi eq, %4, %1 : vector<17x128xi32>
    %6 = arith.extui %5 : vector<17x128xi1> to vector<17x128xi32>
    %7 = arith.sitofp %6 : vector<17x128xi32> to vector<17x128xf32>
    %8 = arith.addf %2, %7 : vector<17x128xf32>
    %c1 = arith.constant 1 : index
    %c0_3 = arith.constant 0 : index
    %9 = vector.load %arg1[%c1, %c0_3] : memref<16x128xi32, #tpu.memory_space<vmem>>, vector<1x128xi32>
    %10 = vector.broadcast %9 : vector<1x128xi32> to vector<17x128xi32>
    %11 = arith.cmpi eq, %10, %1 : vector<17x128xi32>
    %12 = arith.extui %11 : vector<17x128xi1> to vector<17x128xi32>
    %13 = arith.sitofp %12 : vector<17x128xi32> to vector<17x128xf32>
    %14 = arith.addf %8, %13 : vector<17x128xf32>
    %c2 = arith.constant 2 : index
    %c0_4 = arith.constant 0 : index
    %15 = vector.load %arg1[%c2, %c0_4] : memref<16x128xi32, #tpu.memory_space<vmem>>, vector<1x128xi32>
    %16 = vector.broadcast %15 : vector<1x128xi32> to vector<17x128xi32>
    %17 = arith.cmpi eq, %16, %1 : vector<17x128xi32>
    %18 = arith.extui %17 : vector<17x128xi1> to vector<17x128xi32>
    %19 = arith.sitofp %18 : vector<17x128xi32> to vector<17x128xf32>
    %20 = arith.addf %14, %19 : vector<17x128xf32>
    %c3 = arith.constant 3 : index
    %c0_5 = arith.constant 0 : index
    %21 = vector.load %arg1[%c3, %c0_5] : memref<16x128xi32, #tpu.memory_space<vmem>>, vector<1x128xi32>
    %22 = vector.broadcast %21 : vector<1x128xi32> to vector<17x128xi32>
    %23 = arith.cmpi eq, %22, %1 : vector<17x128xi32>
    %24 = arith.extui %23 : vector<17x128xi1> to vector<17x128xi32>
    %25 = arith.sitofp %24 : vector<17x128xi32> to vector<17x128xf32>
    %26 = arith.addf %20, %25 : vector<17x128xf32>
    %c4 = arith.constant 4 : index
    %c0_6 = arith.constant 0 : index
    %27 = vector.load %arg1[%c4, %c0_6] : memref<16x128xi32, #tpu.memory_space<vmem>>, vector<1x128xi32>
    %28 = vector.broadcast %27 : vector<1x128xi32> to vector<17x128xi32>
    %29 = arith.cmpi eq, %28, %1 : vector<17x128xi32>
    %30 = arith.extui %29 : vector<17x128xi1> to vector<17x128xi32>
    %31 = arith.sitofp %30 : vector<17x128xi32> to vector<17x128xf32>
    %32 = arith.addf %26, %31 : vector<17x128xf32>
    %c5 = arith.constant 5 : index
    %c0_7 = arith.constant 0 : index
    %33 = vector.load %arg1[%c5, %c0_7] : memref<16x128xi32, #tpu.memory_space<vmem>>, vector<1x128xi32>
    %34 = vector.broadcast %33 : vector<1x128xi32> to vector<17x128xi32>
    %35 = arith.cmpi eq, %34, %1 : vector<17x128xi32>
    %36 = arith.extui %35 : vector<17x128xi1> to vector<17x128xi32>
    %37 = arith.sitofp %36 : vector<17x128xi32> to vector<17x128xf32>
    %38 = arith.addf %32, %37 : vector<17x128xf32>
    %c6 = arith.constant 6 : index
    %c0_8 = arith.constant 0 : index
    %39 = vector.load %arg1[%c6, %c0_8] : memref<16x128xi32, #tpu.memory_space<vmem>>, vector<1x128xi32>
    %40 = vector.broadcast %39 : vector<1x128xi32> to vector<17x128xi32>
    %41 = arith.cmpi eq, %40, %1 : vector<17x128xi32>
    %42 = arith.extui %41 : vector<17x128xi1> to vector<17x128xi32>
    %43 = arith.sitofp %42 : vector<17x128xi32> to vector<17x128xf32>
    %44 = arith.addf %38, %43 : vector<17x128xf32>
    %c7 = arith.constant 7 : index
    %c0_9 = arith.constant 0 : index
    %45 = vector.load %arg1[%c7, %c0_9] : memref<16x128xi32, #tpu.memory_space<vmem>>, vector<1x128xi32>
    %46 = vector.broadcast %45 : vector<1x128xi32> to vector<17x128xi32>
    %47 = arith.cmpi eq, %46, %1 : vector<17x128xi32>
    %48 = arith.extui %47 : vector<17x128xi1> to vector<17x128xi32>
    %49 = arith.sitofp %48 : vector<17x128xi32> to vector<17x128xf32>
    %50 = arith.addf %44, %49 : vector<17x128xf32>
    %c8 = arith.constant 8 : index
    %c0_10 = arith.constant 0 : index
    %51 = vector.load %arg1[%c8, %c0_10] : memref<16x128xi32, #tpu.memory_space<vmem>>, vector<1x128xi32>
    %52 = vector.broadcast %51 : vector<1x128xi32> to vector<17x128xi32>
    %53 = arith.cmpi eq, %52, %1 : vector<17x128xi32>
    %54 = arith.extui %53 : vector<17x128xi1> to vector<17x128xi32>
    %55 = arith.sitofp %54 : vector<17x128xi32> to vector<17x128xf32>
    %56 = arith.addf %50, %55 : vector<17x128xf32>
    %c9 = arith.constant 9 : index
    %c0_11 = arith.constant 0 : index
    %57 = vector.load %arg1[%c9, %c0_11] : memref<16x128xi32, #tpu.memory_space<vmem>>, vector<1x128xi32>
    %58 = vector.broadcast %57 : vector<1x128xi32> to vector<17x128xi32>
    %59 = arith.cmpi eq, %58, %1 : vector<17x128xi32>
    %60 = arith.extui %59 : vector<17x128xi1> to vector<17x128xi32>
    %61 = arith.sitofp %60 : vector<17x128xi32> to vector<17x128xf32>
    %62 = arith.addf %56, %61 : vector<17x128xf32>
    %c10 = arith.constant 10 : index
    %c0_12 = arith.constant 0 : index
    %63 = vector.load %arg1[%c10, %c0_12] : memref<16x128xi32, #tpu.memory_space<vmem>>, vector<1x128xi32>
    %64 = vector.broadcast %63 : vector<1x128xi32> to vector<17x128xi32>
    %65 = arith.cmpi eq, %64, %1 : vector<17x128xi32>
    %66 = arith.extui %65 : vector<17x128xi1> to vector<17x128xi32>
    %67 = arith.sitofp %66 : vector<17x128xi32> to vector<17x128xf32>
    %68 = arith.addf %62, %67 : vector<17x128xf32>
    %c11 = arith.constant 11 : index
    %c0_13 = arith.constant 0 : index
    %69 = vector.load %arg1[%c11, %c0_13] : memref<16x128xi32, #tpu.memory_space<vmem>>, vector<1x128xi32>
    %70 = vector.broadcast %69 : vector<1x128xi32> to vector<17x128xi32>
    %71 = arith.cmpi eq, %70, %1 : vector<17x128xi32>
    %72 = arith.extui %71 : vector<17x128xi1> to vector<17x128xi32>
    %73 = arith.sitofp %72 : vector<17x128xi32> to vector<17x128xf32>
    %74 = arith.addf %68, %73 : vector<17x128xf32>
    %c12 = arith.constant 12 : index
    %c0_14 = arith.constant 0 : index
    %75 = vector.load %arg1[%c12, %c0_14] : memref<16x128xi32, #tpu.memory_space<vmem>>, vector<1x128xi32>
    %76 = vector.broadcast %75 : vector<1x128xi32> to vector<17x128xi32>
    %77 = arith.cmpi eq, %76, %1 : vector<17x128xi32>
    %78 = arith.extui %77 : vector<17x128xi1> to vector<17x128xi32>
    %79 = arith.sitofp %78 : vector<17x128xi32> to vector<17x128xf32>
    %80 = arith.addf %74, %79 : vector<17x128xf32>
    %c13 = arith.constant 13 : index
    %c0_15 = arith.constant 0 : index
    %81 = vector.load %arg1[%c13, %c0_15] : memref<16x128xi32, #tpu.memory_space<vmem>>, vector<1x128xi32>
    %82 = vector.broadcast %81 : vector<1x128xi32> to vector<17x128xi32>
    %83 = arith.cmpi eq, %82, %1 : vector<17x128xi32>
    %84 = arith.extui %83 : vector<17x128xi1> to vector<17x128xi32>
    %85 = arith.sitofp %84 : vector<17x128xi32> to vector<17x128xf32>
    %86 = arith.addf %80, %85 : vector<17x128xf32>
    %c14 = arith.constant 14 : index
    %c0_16 = arith.constant 0 : index
    %87 = vector.load %arg1[%c14, %c0_16] : memref<16x128xi32, #tpu.memory_space<vmem>>, vector<1x128xi32>
    %88 = vector.broadcast %87 : vector<1x128xi32> to vector<17x128xi32>
    %89 = arith.cmpi eq, %88, %1 : vector<17x128xi32>
    %90 = arith.extui %89 : vector<17x128xi1> to vector<17x128xi32>
    %91 = arith.sitofp %90 : vector<17x128xi32> to vector<17x128xf32>
    %92 = arith.addf %86, %91 : vector<17x128xf32>
    %c15 = arith.constant 15 : index
    %c0_17 = arith.constant 0 : index
    %93 = vector.load %arg1[%c15, %c0_17] : memref<16x128xi32, #tpu.memory_space<vmem>>, vector<1x128xi32>
    %94 = vector.broadcast %93 : vector<1x128xi32> to vector<17x128xi32>
    %95 = arith.cmpi eq, %94, %1 : vector<17x128xi32>
    %96 = arith.extui %95 : vector<17x128xi1> to vector<17x128xi32>
    %97 = arith.sitofp %96 : vector<17x128xi32> to vector<17x128xf32>
    %98 = arith.addf %92, %97 : vector<17x128xf32>
    %cst_18 = arith.constant dense<0.000000e+00> : vector<12x128xf32>
    %99 = tpu.matmul %0, %98, %cst_18 {dimension_numbers = #tpu.dot_dimension_numbers<[1], [0], [0], [1], [0, 0, 1, 1], [], []>, precision = #tpu.contract_precision<fp32>} : vector<12x17xf32>, vector<17x128xf32>, vector<12x128xf32> -> vector<12x128xf32>
    %c0_19 = arith.constant 0 : index
    %c0_20 = arith.constant 0 : index
    %100 = vector.load %arg3[%c0_19, %c0_20] : memref<12x128xf32, #tpu.memory_space<vmem>>, vector<12x128xf32>
    tpu.vector_store %arg3[%c0_19, %c0_20], %99 {strides = array<i32>} : memref<12x128xf32, #tpu.memory_space<vmem>>, vector<12x128xf32>,
    return
  }
  func.func @transform_0(%arg0: i32) -> (i32, i32) {
    %c0_i32 = arith.constant 0 : i32
    %c0_i32_0 = arith.constant 0 : i32
    return %c0_i32, %arg0 : i32, i32
  }
  func.func @transform_1(%arg0: i32) -> (i32, i32) {
    %c0_i32 = arith.constant 0 : i32
    %c0_i32_0 = arith.constant 0 : i32
    %c0_i32_1 = arith.constant 0 : i32
    return %c0_i32, %c0_i32_0 : i32, i32
  }
  func.func @transform_2(%arg0: i32) -> (i32, i32) {
    %c0_i32 = arith.constant 0 : i32
    %c0_i32_0 = arith.constant 0 : i32
    return %c0_i32, %arg0 : i32, i32
  }
}

</mosaic_0001>

<llo_original>
// kernel: tpu_custom_call.1
$region0: #{tpu_custom_call.1}
  #allocation0 [shape = 'u32[]', space=smem, size = 0x4, offset = 0x4, fixed_abs, tag = 'smem constant byte address 0x4 - core index']
  #allocation1 [shape = 'u32[72,128]{1,0:T(1,128)}', space=vmem, size = 0x9000, scoped, tag = 'internal scratch']
  %s0 = inlined_call_operand.hbm [shape: s32[16,128], index: 0, kind: input, shape index: {}]
  %s1 = inlined_call_operand.hbm [shape: f32[12,17], index: 1, kind: input, shape index: {}]
  %s2 = inlined_call_operand.hbm [shape: f32[12,128], index: 2, kind: output, shape index: {}]
  %s3 = sld [smem:[#allocation0]]
  $region26: #{tpu_custom_call.1} parent=0
    _
  %s5 = ssub.s32 1, %s3
  %s6 = scalar_select 0, %s5, %s3
  $region1: #{tpu_custom_call.1} parent=0
    #allocation2 [shape = 'u8[8192]{0}', space=vmem, size = 0x2000, scoped, tag = 'input window, operand 0, single buffered']
    #allocation3 [shape = 's32[1]{0}', space=sflag, size = 0x4, scoped, tag = 'scoped memory for tpu_custom_call.1']
    #allocation4 [shape = 's32[1]{0}', space=sflag, size = 0x4, scoped, tag = 'scoped memory for tpu_custom_call.1']
    #allocation5 [shape = 'u8[8192]{0}', space=vmem, size = 0x2000, scoped, tag = 'input window, operand 1, single buffered']
    #allocation6 [shape = 's32[1]{0}', space=sflag, size = 0x4, scoped, tag = 'scoped memory for tpu_custom_call.1']
    #allocation7 [shape = 'u8[8192]{0}', space=vmem, size = 0x2000, scoped, tag = 'output window, operand 0, single buffered']
    %7 = vsyncpa [#allocation3], 0
    %8 = vsyncpa [#allocation6], 0
    %9 = vsyncpa [#allocation4], 0
    // Predicated region
    $region2: #{tpu_custom_call.1} parent=1 // pred_check
      _
    $region3: #{tpu_custom_call.1} parent=1 // pred_check_branch
      %11 = sbr.rel (0) target = $region5
    $region4: #{tpu_custom_call.1} parent=1 // pred_region
      %13 = vsyncadd [#allocation3], 0
      %s14 = sshll.u32 %s0, 4
      %s15 = int_to_ptr.hbm [resolvable:$true] %s14
      %s16 = sshll.u32 [#allocation2], 4
      %s17 = int_to_ptr.vmem [resolvable:$true] %s16
      %22 = dma.hbm_to_vmem [thread:$0]  %s15, 256, %s17, [#allocation3], 128, 128, 8
    $region5: #{tpu_custom_call.1} parent=1 // pred_fallthru
      _
    // Predicated region
    $region6: #{tpu_custom_call.1} parent=1 // pred_check
      _
    $region7: #{tpu_custom_call.1} parent=1 // pred_check_branch
      %24 = sbr.rel (0) target = $region9
    $region8: #{tpu_custom_call.1} parent=1 // pred_region
      %26 = vsyncadd [#allocation6], 0
      %s27 = sshll.u32 %s1, 4
      %s28 = int_to_ptr.hbm [resolvable:$true] %s27
      %s29 = sshll.u32 [#allocation5], 4
      %s30 = int_to_ptr.vmem [resolvable:$true] %s29
      %35 = dma.hbm_to_vmem [thread:$0]  %s28, 256, %s30, [#allocation6], 128, 128, 8
    $region9: #{tpu_custom_call.1} parent=1 // pred_fallthru
      _
    // Predicated region
    $region10: #{tpu_custom_call.1} parent=1 // pred_check
      _
    $region11: #{tpu_custom_call.1} parent=1 // pred_check_branch
      %37 = sbr.rel (0) target = $region13
    $region12: #{tpu_custom_call.1} parent=1 // pred_region
      %39 = dma.done [#allocation3], 256
    $region13: #{tpu_custom_call.1} parent=1 // pred_fallthru
      _
    // Predicated region
    $region14: #{tpu_custom_call.1} parent=1 // pred_check
      _
    $region15: #{tpu_custom_call.1} parent=1 // pred_check_branch
      %41 = sbr.rel (0) target = $region17
    $region16: #{tpu_custom_call.1} parent=1 // pred_region
      %43 = dma.done [#allocation6], 256
    $region17: #{tpu_custom_call.1} parent=1 // pred_fallthru
      _
    %v44 = vld [vmem:[#allocation5] sm:$0xff]
    %v45 = vld [vmem:[#allocation5 + $0x8] sm:$0xf]
    %v46 = vlaneseq
    %v47 = vshrl.u32 %v46, 7
    %v48 = vadd.s32 %v47, 8
    %v49 = vadd.s32 %v47, 16
    %v50 = vld [vmem:[#allocation2] sm:$0x1]
    %v51 = vperm.slane %v50, 0
    %vm52 = vcmp.eq.s32.totalorder %v51, %v47
    %vm53 = vcmp.eq.s32.totalorder %v51, %v48
    %vm54 = vcmp.eq.s32.totalorder %v51, %v49
    %v55 = vsel %vm52, 1, 0
    %v56 = vsel %vm53, 1, 0
    %v57 = vsel %vm54, 1, 0
    %v58 = vcvt.s32.f32 %v55
    %v59 = vcvt.s32.f32 %v56
    %v60 = vcvt.s32.f32 %v57
    %v61 = vadd.f32 %v58, 0.0
    %v62 = vadd.f32 %v59, 0.0
    %v63 = vadd.f32 %v60, 0.0
    %v64 = vld [vmem:[#allocation2 + $0x1] sm:$0x1]
    %v65 = vperm.slane %v64, 0
    %vm66 = vcmp.eq.s32.totalorder %v65, %v47
    %vm67 = vcmp.eq.s32.totalorder %v65, %v48
    %vm68 = vcmp.eq.s32.totalorder %v65, %v49
    %v69 = vsel %vm66, 1, 0
    %v70 = vsel %vm67, 1, 0
    %v71 = vsel %vm68, 1, 0
    %v72 = vcvt.s32.f32 %v69
    %v73 = vcvt.s32.f32 %v70
    %v74 = vcvt.s32.f32 %v71
    %v75 = vadd.f32 %v61, %v72
    %v76 = vadd.f32 %v62, %v73
    %v77 = vadd.f32 %v63, %v74
    %v78 = vld [vmem:[#allocation2 + $0x2] sm:$0x1]
    %v79 = vperm.slane %v78, 0
    %vm80 = vcmp.eq.s32.totalorder %v79, %v47
    %vm81 = vcmp.eq.s32.totalorder %v79, %v48
    %vm82 = vcmp.eq.s32.totalorder %v79, %v49
    %v83 = vsel %vm80, 1, 0
    %v84 = vsel %vm81, 1, 0
    %v85 = vsel %vm82, 1, 0
    %v86 = vcvt.s32.f32 %v83
    %v87 = vcvt.s32.f32 %v84
    %v88 = vcvt.s32.f32 %v85
    %v89 = vadd.f32 %v75, %v86
    %v90 = vadd.f32 %v76, %v87
    %v91 = vadd.f32 %v77, %v88
    %v92 = vld [vmem:[#allocation2 + $0x3] sm:$0x1]
    %v93 = vperm.slane %v92, 0
    %vm94 = vcmp.eq.s32.totalorder %v93, %v47
    %vm95 = vcmp.eq.s32.totalorder %v93, %v48
    %vm96 = vcmp.eq.s32.totalorder %v93, %v49
    %v97 = vsel %vm94, 1, 0
    %v98 = vsel %vm95, 1, 0
    %v99 = vsel %vm96, 1, 0
    %v100 = vcvt.s32.f32 %v97
    %v101 = vcvt.s32.f32 %v98
    %v102 = vcvt.s32.f32 %v99
    %v103 = vadd.f32 %v89, %v100
    %v104 = vadd.f32 %v90, %v101
    %v105 = vadd.f32 %v91, %v102
    %v106 = vld [vmem:[#allocation2 + $0x4] sm:$0x1]
    %v107 = vperm.slane %v106, 0
    %vm108 = vcmp.eq.s32.totalorder %v107, %v47
    %vm109 = vcmp.eq.s32.totalorder %v107, %v48
    %vm110 = vcmp.eq.s32.totalorder %v107, %v49
    %v111 = vsel %vm108, 1, 0
    %v112 = vsel %vm109, 1, 0
    %v113 = vsel %vm110, 1, 0
    %v114 = vcvt.s32.f32 %v111
    %v115 = vcvt.s32.f32 %v112
    %v116 = vcvt.s32.f32 %v113
    %v117 = vadd.f32 %v103, %v114
    %v118 = vadd.f32 %v104, %v115
    %v119 = vadd.f32 %v105, %v116
    %v120 = vld [vmem:[#allocation2 + $0x5] sm:$0x1]
    %v121 = vperm.slane %v120, 0
    %vm122 = vcmp.eq.s32.totalorder %v121, %v47
    %vm123 = vcmp.eq.s32.totalorder %v121, %v48
    %vm124 = vcmp.eq.s32.totalorder %v121, %v49
    %v125 = vsel %vm122, 1, 0
    %v126 = vsel %vm123, 1, 0
    %v127 = vsel %vm124, 1, 0
    %v128 = vcvt.s32.f32 %v125
    %v129 = vcvt.s32.f32 %v126
    %v130 = vcvt.s32.f32 %v127
    %v131 = vadd.f32 %v117, %v128
    %v132 = vadd.f32 %v118, %v129
    %v133 = vadd.f32 %v119, %v130
    %v134 = vld [vmem:[#allocation2 + $0x6] sm:$0x1]
    %v135 = vperm.slane %v134, 0
    %vm136 = vcmp.eq.s32.totalorder %v135, %v47
    %vm137 = vcmp.eq.s32.totalorder %v135, %v48
    %vm138 = vcmp.eq.s32.totalorder %v135, %v49
    %v139 = vsel %vm136, 1, 0
    %v140 = vsel %vm137, 1, 0
    %v141 = vsel %vm138, 1, 0
    %v142 = vcvt.s32.f32 %v139
    %v143 = vcvt.s32.f32 %v140
    %v144 = vcvt.s32.f32 %v141
    %v145 = vadd.f32 %v131, %v142
    %v146 = vadd.f32 %v132, %v143
    %v147 = vadd.f32 %v133, %v144
    %v148 = vld [vmem:[#allocation2 + $0x7] sm:$0x1]
    %v149 = vperm.slane %v148, 0
    %vm150 = vcmp.eq.s32.totalorder %v149, %v47
    %vm151 = vcmp.eq.s32.totalorder %v149, %v48
    %vm152 = vcmp.eq.s32.totalorder %v149, %v49
    %v153 = vsel %vm150, 1, 0
    %v154 = vsel %vm151, 1, 0
    %v155 = vsel %vm152, 1, 0
    %v156 = vcvt.s32.f32 %v153
    %v157 = vcvt.s32.f32 %v154
    %v158 = vcvt.s32.f32 %v155
    %v159 = vadd.f32 %v145, %v156
    %v160 = vadd.f32 %v146, %v157
    %v161 = vadd.f32 %v147, %v158
    %v162 = vld [vmem:[#allocation2 + $0x8] sm:$0x1]
    %v163 = vperm.slane %v162, 0
    %vm164 = vcmp.eq.s32.totalorder %v163, %v47
    %vm165 = vcmp.eq.s32.totalorder %v163, %v48
    %vm166 = vcmp.eq.s32.totalorder %v163, %v49
    %v167 = vsel %vm164, 1, 0
    %v168 = vsel %vm165, 1, 0
    %v169 = vsel %vm166, 1, 0
    %v170 = vcvt.s32.f32 %v167
    %v171 = vcvt.s32.f32 %v168
    %v172 = vcvt.s32.f32 %v169
    %v173 = vadd.f32 %v159, %v170
    %v174 = vadd.f32 %v160, %v171
    %v175 = vadd.f32 %v161, %v172
    %v176 = vld [vmem:[#allocation2 + $0x9] sm:$0x1]
    %v177 = vperm.slane %v176, 0
    %vm178 = vcmp.eq.s32.totalorder %v177, %v47
    %vm179 = vcmp.eq.s32.totalorder %v177, %v48
    %vm180 = vcmp.eq.s32.totalorder %v177, %v49
    %v181 = vsel %vm178, 1, 0
    %v182 = vsel %vm179, 1, 0
    %v183 = vsel %vm180, 1, 0
    %v184 = vcvt.s32.f32 %v181
    %v185 = vcvt.s32.f32 %v182
    %v186 = vcvt.s32.f32 %v183
    %v187 = vadd.f32 %v173, %v184
    %v188 = vadd.f32 %v174, %v185
    %v189 = vadd.f32 %v175, %v186
    %v190 = vld [vmem:[#allocation2 + $0xa] sm:$0x1]
    %v191 = vperm.slane %v190, 0
    %vm192 = vcmp.eq.s32.totalorder %v191, %v47
    %vm193 = vcmp.eq.s32.totalorder %v191, %v48
    %vm194 = vcmp.eq.s32.totalorder %v191, %v49
    %v195 = vsel %vm192, 1, 0
    %v196 = vsel %vm193, 1, 0
    %v197 = vsel %vm194, 1, 0
    %v198 = vcvt.s32.f32 %v195
    %v199 = vcvt.s32.f32 %v196
    %v200 = vcvt.s32.f32 %v197
    %v201 = vadd.f32 %v187, %v198
    %v202 = vadd.f32 %v188, %v199
    %v203 = vadd.f32 %v189, %v200
    %v204 = vld [vmem:[#allocation2 + $0xb] sm:$0x1]
    %v205 = vperm.slane %v204, 0
    %vm206 = vcmp.eq.s32.totalorder %v205, %v47
    %vm207 = vcmp.eq.s32.totalorder %v205, %v48
    %vm208 = vcmp.eq.s32.totalorder %v205, %v49
    %v209 = vsel %vm206, 1, 0
    %v210 = vsel %vm207, 1, 0
    %v211 = vsel %vm208, 1, 0
    %v212 = vcvt.s32.f32 %v209
    %v213 = vcvt.s32.f32 %v210
    %v214 = vcvt.s32.f32 %v211
    %v215 = vadd.f32 %v201, %v212
    %v216 = vadd.f32 %v202, %v213
    %v217 = vadd.f32 %v203, %v214
    %v218 = vld [vmem:[#allocation2 + $0xc] sm:$0x1]
    %v219 = vperm.slane %v218, 0
    %vm220 = vcmp.eq.s32.totalorder %v219, %v47
    %vm221 = vcmp.eq.s32.totalorder %v219, %v48
    %vm222 = vcmp.eq.s32.totalorder %v219, %v49
    %v223 = vsel %vm220, 1, 0
    %v224 = vsel %vm221, 1, 0
    %v225 = vsel %vm222, 1, 0
    %v226 = vcvt.s32.f32 %v223
    %v227 = vcvt.s32.f32 %v224
    %v228 = vcvt.s32.f32 %v225
    %v229 = vadd.f32 %v215, %v226
    %v230 = vadd.f32 %v216, %v227
    %v231 = vadd.f32 %v217, %v228
    %v232 = vld [vmem:[#allocation2 + $0xd] sm:$0x1]
    %v233 = vperm.slane %v232, 0
    %vm234 = vcmp.eq.s32.totalorder %v233, %v47
    %vm235 = vcmp.eq.s32.totalorder %v233, %v48
    %vm236 = vcmp.eq.s32.totalorder %v233, %v49
    %v237 = vsel %vm234, 1, 0
    %v238 = vsel %vm235, 1, 0
    %v239 = vsel %vm236, 1, 0
    %v240 = vcvt.s32.f32 %v237
    %v241 = vcvt.s32.f32 %v238
    %v242 = vcvt.s32.f32 %v239
    %v243 = vadd.f32 %v229, %v240
    %v244 = vadd.f32 %v230, %v241
    %v245 = vadd.f32 %v231, %v242
    %v246 = vld [vmem:[#allocation2 + $0xe] sm:$0x1]
    %v247 = vperm.slane %v246, 0
    %vm248 = vcmp.eq.s32.totalorder %v247, %v47
    %vm249 = vcmp.eq.s32.totalorder %v247, %v48
    %vm250 = vcmp.eq.s32.totalorder %v247, %v49
    %v251 = vsel %vm248, 1, 0
    %v252 = vsel %vm249, 1, 0
    %v253 = vsel %vm250, 1, 0
    %v254 = vcvt.s32.f32 %v251
    %v255 = vcvt.s32.f32 %v252
    %v256 = vcvt.s32.f32 %v253
    %v257 = vadd.f32 %v243, %v254
    %v258 = vadd.f32 %v244, %v255
    %v259 = vadd.f32 %v245, %v256
    %v260 = vld [vmem:[#allocation2 + $0xf] sm:$0x1]
    %v261 = vperm.slane %v260, 0
    %vm262 = vcmp.eq.s32.totalorder %v261, %v47
    %vm263 = vcmp.eq.s32.totalorder %v261, %v48
    %vm264 = vcmp.eq.s32.totalorder %v261, %v49
    %v265 = vsel %vm262, 1, 0
    %v266 = vsel %vm263, 1, 0
    %v267 = vsel %vm264, 1, 0
    %v268 = vcvt.s32.f32 %v265
    %v269 = vcvt.s32.f32 %v266
    %v270 = vcvt.s32.f32 %v267
    %v271 = vadd.f32 %v257, %v268
    %v272 = vadd.f32 %v258, %v269
    %v273 = vadd.f32 %v259, %v270
    %vm274 = vcmask 138240
    %v276 = vsel %vm274, %v44, 0
    %v279 = vsel %vm274, %v45, 0
    %vm281 = vcmask 1040384
    %v283 = vsel %vm281, %v273, 0
    %285 = vmatpush.msra.mxu0 0.0
    %286 = vmatpush.msra.mxu0 0.0
    %287 = vmatpush.msra.mxu0 0.0
    %288 = vmatpush.msra.mxu0 0.0
    %289 = vmatpush.msra.mxu0 0.0
    %290 = vmatpush.msra.mxu0 0.0
    %291 = vmatpush.msra.mxu0 0.0
    %292 = vmatpush.msra.mxu0 0.0
    %293 = vmatpush.msra.mxu0 0.0
    %294 = vmatpush.msra.mxu0 0.0
    %295 = vmatpush.msra.mxu0 0.0
    %296 = vmatpush.msra.mxu0 0.0
    %297 = vmatpush.msra.mxu0 0.0
    %v298 = vand.u32 %v283, 4294901760
    %299 = vmatpush.msra.mxu0 %v298
    %v300 = vand.u32 %v272, 4294901760
    %301 = vmatpush.msra.mxu0 %v300
    %v302 = vand.u32 %v271, 4294901760
    %303 = vmatpush.msra.mxu0 %v302
    %v304 = vand.u32 %v276, 4294901760
    %v305 = vsub.f32 %v276, %v304
    %v306 = vand.u32 %v305, 4294901760
    %v307 = vsub.f32 %v305, %v306
    %v308 = vand.u32 %v307, 4294901760
    %309 = vmatmul.f32.gmra.mxu0 %v308
    %v310 = vpop.f32.mrf.mxu0
    %v311 = vadd.f32 0.0, %v310
    %v312 = vand.u32 %v279, 4294901760
    %v313 = vsub.f32 %v279, %v312
    %v314 = vand.u32 %v313, 4294901760
    %v315 = vsub.f32 %v313, %v314
    %v316 = vand.u32 %v315, 4294901760
    %317 = vmatmul.f32.gmra.mxu0 %v316
    %v318 = vpop.f32.mrf.mxu0
    %v319 = vadd.f32 0.0, %v318
    %320 = vdwg.mxu0
    %321 = vmatpush.msra.mxu0 0.0
    %322 = vmatpush.msra.mxu0 0.0
    %323 = vmatpush.msra.mxu0 0.0
    %324 = vmatpush.msra.mxu0 0.0
    %325 = vmatpush.msra.mxu0 0.0
    %326 = vmatpush.msra.mxu0 0.0
    %327 = vmatpush.msra.mxu0 0.0
    %328 = vmatpush.msra.mxu0 0.0
    %329 = vmatpush.msra.mxu0 0.0
    %330 = vmatpush.msra.mxu0 0.0
    %331 = vmatpush.msra.mxu0 0.0
    %332 = vmatpush.msra.mxu0 0.0
    %333 = vmatpush.msra.mxu0 0.0
    %v334 = vand.u32 %v283, 4294901760
    %v335 = vsub.f32 %v283, %v334
    %v336 = vand.u32 %v335, 4294901760
    %v337 = vsub.f32 %v335, %v336
    %v338 = vand.u32 %v337, 4294901760
    %339 = vmatpush.msra.mxu0 %v338
    %v340 = vand.u32 %v272, 4294901760
    %v341 = vsub.f32 %v272, %v340
    %v342 = vand.u32 %v341, 4294901760
    %v343 = vsub.f32 %v341, %v342
    %v344 = vand.u32 %v343, 4294901760
    %345 = vmatpush.msra.mxu0 %v344
    %v346 = vand.u32 %v271, 4294901760
    %v347 = vsub.f32 %v271, %v346
    %v348 = vand.u32 %v347, 4294901760
    %v349 = vsub.f32 %v347, %v348
    %v350 = vand.u32 %v349, 4294901760
    %351 = vmatpush.msra.mxu0 %v350
    %v352 = vand.u32 %v276, 4294901760
    %353 = vmatmul.f32.gmra.mxu0 %v352
    %v354 = vpop.f32.mrf.mxu0
    %v355 = vadd.f32 %v311, %v354
    %v356 = vand.u32 %v279, 4294901760
    %357 = vmatmul.f32.gmra.mxu0 %v356
    %v358 = vpop.f32.mrf.mxu0
    %v359 = vadd.f32 %v319, %v358
    %360 = vdwg.mxu0
    %361 = vmatpush.msra.mxu0 0.0
    %362 = vmatpush.msra.mxu0 0.0
    %363 = vmatpush.msra.mxu0 0.0
    %364 = vmatpush.msra.mxu0 0.0
    %365 = vmatpush.msra.mxu0 0.0
    %366 = vmatpush.msra.mxu0 0.0
    %367 = vmatpush.msra.mxu0 0.0
    %368 = vmatpush.msra.mxu0 0.0
    %369 = vmatpush.msra.mxu0 0.0
    %370 = vmatpush.msra.mxu0 0.0
    %371 = vmatpush.msra.mxu0 0.0
    %372 = vmatpush.msra.mxu0 0.0
    %373 = vmatpush.msra.mxu0 0.0
    %v374 = vand.u32 %v283, 4294901760
    %v375 = vsub.f32 %v283, %v374
    %376 = vmatpush.msra.mxu0 %v375
    %v377 = vand.u32 %v272, 4294901760
    %v378 = vsub.f32 %v272, %v377
    %379 = vmatpush.msra.mxu0 %v378
    %v380 = vand.u32 %v271, 4294901760
    %v381 = vsub.f32 %v271, %v380
    %382 = vmatpush.msra.mxu0 %v381
    %v383 = vand.u32 %v276, 4294901760
    %v384 = vsub.f32 %v276, %v383
    %385 = vmatmul.f32.gmra.mxu0 %v384
    %v386 = vpop.f32.mrf.mxu0
    %v387 = vadd.f32 %v355, %v386
    %v388 = vand.u32 %v279, 4294901760
    %v389 = vsub.f32 %v279, %v388
    %390 = vmatmul.f32.gmra.mxu0 %v389
    %v391 = vpop.f32.mrf.mxu0
    %v392 = vadd.f32 %v359, %v391
    %393 = vdwg.mxu0
    %394 = vmatpush.msra.mxu0 0.0
    %395 = vmatpush.msra.mxu0 0.0
    %396 = vmatpush.msra.mxu0 0.0
    %397 = vmatpush.msra.mxu0 0.0
    %398 = vmatpush.msra.mxu0 0.0
    %399 = vmatpush.msra.mxu0 0.0
    %400 = vmatpush.msra.mxu0 0.0
    %401 = vmatpush.msra.mxu0 0.0
    %402 = vmatpush.msra.mxu0 0.0
    %403 = vmatpush.msra.mxu0 0.0
    %404 = vmatpush.msra.mxu0 0.0
    %405 = vmatpush.msra.mxu0 0.0
    %406 = vmatpush.msra.mxu0 0.0
    %v407 = vand.u32 %v283, 4294901760
    %408 = vmatpush.msra.mxu0 %v407
    %v409 = vand.u32 %v272, 4294901760
    %410 = vmatpush.msra.mxu0 %v409
    %v411 = vand.u32 %v271, 4294901760
    %412 = vmatpush.msra.mxu0 %v411
    %v413 = vand.u32 %v276, 4294901760
    %v414 = vsub.f32 %v276, %v413
    %v415 = vand.u32 %v414, 4294901760
    %416 = vmatmul.f32.gmra.mxu0 %v415
    %v417 = vpop.f32.mrf.mxu0
    %v418 = vadd.f32 %v387, %v417
    %v419 = vand.u32 %v279, 4294901760
    %v420 = vsub.f32 %v279, %v419
    %v421 = vand.u32 %v420, 4294901760
    %422 = vmatmul.f32.gmra.mxu0 %v421
    %v423 = vpop.f32.mrf.mxu0
    %v424 = vadd.f32 %v392, %v423
    %425 = vdwg.mxu0
    %426 = vmatpush.msra.mxu0 0.0
    %427 = vmatpush.msra.mxu0 0.0
    %428 = vmatpush.msra.mxu0 0.0
    %429 = vmatpush.msra.mxu0 0.0
    %430 = vmatpush.msra.mxu0 0.0
    %431 = vmatpush.msra.mxu0 0.0
    %432 = vmatpush.msra.mxu0 0.0
    %433 = vmatpush.msra.mxu0 0.0
    %434 = vmatpush.msra.mxu0 0.0
    %435 = vmatpush.msra.mxu0 0.0
    %436 = vmatpush.msra.mxu0 0.0
    %437 = vmatpush.msra.mxu0 0.0
    %438 = vmatpush.msra.mxu0 0.0
    %v439 = vand.u32 %v283, 4294901760
    %v440 = vsub.f32 %v283, %v439
    %v441 = vand.u32 %v440, 4294901760
    %442 = vmatpush.msra.mxu0 %v441
    %v443 = vand.u32 %v272, 4294901760
    %v444 = vsub.f32 %v272, %v443
    %v445 = vand.u32 %v444, 4294901760
    %446 = vmatpush.msra.mxu0 %v445
    %v447 = vand.u32 %v271, 4294901760
    %v448 = vsub.f32 %v271, %v447
    %v449 = vand.u32 %v448, 4294901760
    %450 = vmatpush.msra.mxu0 %v449
    %v451 = vand.u32 %v276, 4294901760
    %452 = vmatmul.f32.gmra.mxu0 %v451
    %v453 = vpop.f32.mrf.mxu0
    %v454 = vadd.f32 %v418, %v453
    %v455 = vand.u32 %v279, 4294901760
    %456 = vmatmul.f32.gmra.mxu0 %v455
    %v457 = vpop.f32.mrf.mxu0
    %v458 = vadd.f32 %v424, %v457
    %459 = vdwg.mxu0
    %460 = vmatpush.msra.mxu0 0.0
    %461 = vmatpush.msra.mxu0 0.0
    %462 = vmatpush.msra.mxu0 0.0
    %463 = vmatpush.msra.mxu0 0.0
    %464 = vmatpush.msra.mxu0 0.0
    %465 = vmatpush.msra.mxu0 0.0
    %466 = vmatpush.msra.mxu0 0.0
    %467 = vmatpush.msra.mxu0 0.0
    %468 = vmatpush.msra.mxu0 0.0
    %469 = vmatpush.msra.mxu0 0.0
    %470 = vmatpush.msra.mxu0 0.0
    %471 = vmatpush.msra.mxu0 0.0
    %472 = vmatpush.msra.mxu0 0.0
    %v473 = vand.u32 %v283, 4294901760
    %474 = vmatpush.msra.mxu0 %v473
    %v475 = vand.u32 %v272, 4294901760
    %476 = vmatpush.msra.mxu0 %v475
    %v477 = vand.u32 %v271, 4294901760
    %478 = vmatpush.msra.mxu0 %v477
    %v479 = vand.u32 %v276, 4294901760
    %480 = vmatmul.f32.gmra.mxu0 %v479
    %v481 = vpop.f32.mrf.mxu0
    %v482 = vadd.f32 %v454, %v481
    %v483 = vand.u32 %v279, 4294901760
    %484 = vmatmul.f32.gmra.mxu0 %v483
    %v485 = vpop.f32.mrf.mxu0
    %v486 = vadd.f32 %v458, %v485
    %487 = vdwg.mxu0
    %488 = vst [vmem:[#allocation7] sm:$0xff] %v482
    %489 = vst [vmem:[#allocation7 + $0x8] sm:$0xf] %v486
    // Predicated region
    $region18: #{tpu_custom_call.1} parent=1 // pred_check
      _
    $region19: #{tpu_custom_call.1} parent=1 // pred_check_branch
      %491 = sbr.rel (0) target = $region21
    $region20: #{tpu_custom_call.1} parent=1 // pred_region
      %493 = vsyncadd [#allocation4], 0
      %s494 = sshll.u32 [#allocation7], 4
      %s495 = int_to_ptr.vmem [resolvable:$true] %s494
      %s496 = sshll.u32 %s2, 4
      %s497 = int_to_ptr.hbm [resolvable:$true] %s496
      %502 = dma.vmem_to_hbm [thread:$0]  %s495, 256, %s497, [#allocation4], 128, 128, 8
    $region21: #{tpu_custom_call.1} parent=1 // pred_fallthru
      _
    // Predicated region
    $region22: #{tpu_custom_call.1} parent=1 // pred_check
      _
    $region23: #{tpu_custom_call.1} parent=1 // pred_check_branch
      %504 = sbr.rel (0) target = $region25
    $region24: #{tpu_custom_call.1} parent=1 // pred_region
      %506 = dma.done [#allocation4], 256
    $region25: #{tpu_custom_call.1} parent=1 // pred_fallthru
      _
    %507 = vsyncpa [#allocation3], 1
    %508 = vsyncpa [#allocation6], 1
    %509 = vsyncpa [#allocation4], 1

</llo_original>
